<compile_context>
chip_gen: v7x
topology: tpu7x:2x2x1
jax: 0.10.0
libtpu: 0.0.40
codegen_flags: <defaults>
</compile_context>

<pallas_src>
import functools

import jax
import jax.numpy as jnp
from jax import lax
from jax.experimental import pallas as pl
from jax.experimental.pallas import tpu as pltpu


_SIM_THRESHOLD = 0.01  # hard-coded in the PyTorch forward


def _contrastive_loss_kernel(fq_ref, fk_ref, pq_ref, pk_ref, out_ref, *,
                             inv_temp, threshold, tq, tk, batch,
                             needs_mask, use_bf16_matmul):
    ki = pl.program_id(1)

    # Zero the per-query-tile accumulator at the start of the k reduction.
    @pl.when(ki == 0)
    def _init():
        out_ref[...] = jnp.zeros_like(out_ref)

    fq = fq_ref[...].astype(jnp.float32)              # (tq, D)
    fk = fk_ref[...].astype(jnp.float32)              # (tk, D)

    # F.normalize(x, p=2, dim=1): x / max(||x||, 1e-12) == x * rsqrt(max(||x||^2, 1e-24))
    def _l2_normalize(x):
        ss = jnp.sum(x * x, axis=1, keepdims=True)
        return x * lax.rsqrt(jnp.maximum(ss, 1e-24))

    fqn = _l2_normalize(fq)
    fkn = _l2_normalize(fk)
    if use_bf16_matmul:                               # optional: faster MXU path on v6e/v7x
        fqn = fqn.astype(jnp.bfloat16)
        fkn = fkn.astype(jnp.bfloat16)

    # Cosine-similarity tile on the MXU, contracting the feature axis of both
    # operands directly (no explicit .T / relayout).
    sim = lax.dot_general(fqn, fkn, (((1,), (1,)), ((), ())),
                          preferred_element_type=jnp.float32)
    # Scale by 1/T and subtract the global bound 1/T (|cosine| <= 1); the shift
    # cancels exactly in the pos/neg ratios and keeps exp() finite.
    exp_sim = jnp.exp(sim * inv_temp - inv_temp)

    # Pairwise parameter distance: squared-threshold comparison (no abs / sqrt).
    pq = pq_ref[...].astype(jnp.float32)              # (tq, 2): [:, 0]=f, [:, 1]=k
    pk = pk_ref[...].astype(jnp.float32)              # (2, tk): [0, :]=f, [1, :]=k
    f_diff = pq[:, 0:1] - pk[0:1, :]                  # (tq, tk)
    k_diff = pq[:, 1:2] - pk[1:2, :]
    d2 = f_diff * f_diff + k_diff * k_diff
    pos_mask = d2 < threshold * threshold
    neg_mask = d2 > (3.0 * threshold) * (3.0 * threshold)

    if needs_mask:
        # Mask out zero-padded rows/cols (only present when B % tile != 0).
        qi = pl.program_id(0)
        q_idx = qi * tq + lax.broadcasted_iota(jnp.int32, (tq, 1), 0)
        k_idx = ki * tk + lax.broadcasted_iota(jnp.int32, (1, tk), 1)
        valid = (q_idx < batch) & (k_idx < batch)
        exp_sim = jnp.where(valid, exp_sim, 0.0)
        pos_mask = pos_mask & valid
        neg_mask = neg_mask & valid

    posf = pos_mask.astype(jnp.float32)
    negf = neg_mask.astype(jnp.float32)

    t_total = jnp.sum(exp_sim)
    t_pos = jnp.sum(exp_sim * posf)
    t_neg = jnp.sum(exp_sim * negf)
    t_pcnt = jnp.sum(posf)
    t_ncnt = jnp.sum(negf)

    # Pack the five partial sums into lanes 0..4 of the lane-dense accumulator.
    lane = lax.broadcasted_iota(jnp.int32, out_ref.shape, 2)
    contrib = (jnp.where(lane == 0, t_total, 0.0)
               + jnp.where(lane == 1, t_pos, 0.0)
               + jnp.where(lane == 2, t_neg, 0.0)
               + jnp.where(lane == 3, t_pcnt, 0.0)
               + jnp.where(lane == 4, t_ncnt, 0.0))
    out_ref[...] += contrib


def contrastive_loss(features, f_params, k_params, *, temperature=0.5, margin=1.0,
                     tile=256, use_bf16_matmul=False):
    """Pallas implementation of ContrastiveLoss.forward.

    Args:
      features: (B, D) float array.
      f_params: (B,) float array.
      k_params: (B,) float array.
    Returns:
      scalar float32 loss (matches the PyTorch forward).
    """
    del margin  # unused in the PyTorch forward as well
    B, D = features.shape
    features = features.astype(jnp.float32)
    f_params = f_params.astype(jnp.float32)
    k_params = k_params.astype(jnp.float32)

    # Tile sizes: single tile for small batches; 128-aligned tiles otherwise.
    if B <= tile:
        tq = tk = B
    else:
        tq = tk = tile  # tile defaults to 256 (multiple of 128, fits VMEM on v5e/v6e/v7x)
    Bp = -(-B // tq) * tq
    needs_mask = Bp != B
    if needs_mask:
        pad = Bp - B
        features = jnp.pad(features, ((0, pad), (0, 0)))
        f_params = jnp.pad(f_params, (0, pad), constant_values=1e6)
        k_params = jnp.pad(k_params, (0, pad), constant_values=-1e6)

    # Pack f/k once: a column view for the query side, a row view for the key side.
    params_col = jnp.stack([f_params, k_params], axis=1)   # (Bp, 2)
    params_row = jnp.stack([f_params, k_params], axis=0)   # (2, Bp)

    nq = Bp // tq
    nk = Bp // tk

    kernel = functools.partial(
        _contrastive_loss_kernel,
        inv_temp=1.0 / float(temperature),
        threshold=_SIM_THRESHOLD,
        tq=tq, tk=tk, batch=B,
        needs_mask=needs_mask,
        use_bf16_matmul=use_bf16_matmul)

    grid_spec = pltpu.PrefetchScalarGridSpec(
        num_scalar_prefetch=0,
        grid=(nq, nk),  # reduction (k) axis last
        in_specs=[
            pl.BlockSpec((tq, D), lambda qi, ki: (qi, 0)),   # query feature tile
            pl.BlockSpec((tk, D), lambda qi, ki: (ki, 0)),   # key feature tile
            pl.BlockSpec((tq, 2), lambda qi, ki: (qi, 0)),   # query f/k params (column view)
            pl.BlockSpec((2, tk), lambda qi, ki: (0, ki)),   # key f/k params (row view)
        ],
        out_specs=pl.BlockSpec((1, 8, 128), lambda qi, ki: (qi, 0, 0)),
    )

    cost = pl.CostEstimate(
        flops=int(2 * Bp * Bp * D + 12 * Bp * Bp),
        transcendentals=int(Bp * Bp),
        bytes_accessed=int(2 * Bp * D * 4 + 4 * Bp * 4 + nq * 8 * 128 * 4),
    )

    partials = pl.pallas_call(
        kernel,
        out_shape=jax.ShapeDtypeStruct((nq, 8, 128), jnp.float32),
        grid_spec=grid_spec,
        compiler_params=pltpu.CompilerParams(
            dimension_semantics=("parallel", "arbitrary")),
        cost_estimate=cost,
    )(features, features, params_col, params_row)

    # Tiny scalar finalize — done once, outside the grid loop.
    parts = jnp.sum(partials[:, 0, :], axis=0)               # (128,)
    total = parts[0]
    pos_sum, neg_sum = parts[1], parts[2]
    pos_cnt, neg_cnt = parts[3], parts[4]

    # Guard the dead branches so log(0) never appears (forward is a select either way).
    safe_pos = jnp.where(pos_cnt > 0, pos_sum, total)
    safe_neg = jnp.where(neg_cnt > 0, neg_sum, total)
    positive_loss = jnp.where(pos_cnt > 0, -jnp.log(safe_pos / total), 0.0)
    negative_loss = jnp.where(neg_cnt > 0, jnp.log(safe_neg / total), 0.0)
    return positive_loss + negative_loss


def _reference_contrastive_loss(features, f_params, k_params, temperature=0.5):
    """Pure-JAX reference mirroring the PyTorch forward exactly."""
    f_diff = jnp.abs(f_params[:, None] - f_params[None, :])
    k_diff = jnp.abs(k_params[:, None] - k_params[None, :])
    param_distance = jnp.sqrt(f_diff ** 2 + k_diff ** 2)
    positive_mask = param_distance < 0.01
    negative_mask = param_distance > 0.03
    norm = jnp.maximum(jnp.linalg.norm(features, axis=1, keepdims=True), 1e-12)
    fn = features / norm
    sim = fn @ fn.T / temperature
    exp_sim = jnp.exp(sim)
    total = exp_sim.sum()
    pos_sum = jnp.where(positive_mask, exp_sim, 0.0).sum()
    neg_sum = jnp.where(negative_mask, exp_sim, 0.0).sum()
    pos_loss = jnp.where(positive_mask.sum() > 0, -jnp.log(pos_sum / total), 0.0)
    neg_loss = jnp.where(negative_mask.sum() > 0, jnp.log(neg_sum / total), 0.0)
    return pos_loss + neg_loss


if __name__ == "__main__":
    key = jax.random.PRNGKey(0)
    B, D = 8, 32

    kf, kk, kx = jax.random.split(key, 3)
    features = jax.random.normal(kx, (B, D), dtype=jnp.float32)

    # Gray-Scott-like f/k parameters: a few near-duplicates (positive pairs) and
    # some well-separated values (negative pairs).
    base_f = jnp.array([0.030, 0.0305, 0.035, 0.0352, 0.050, 0.0501, 0.060, 0.090],
                       dtype=jnp.float32)
    base_k = jnp.array([0.060, 0.0602, 0.062, 0.0621, 0.065, 0.0651, 0.070, 0.100],
                       dtype=jnp.float32)
    f_params = base_f + 1e-4 * jax.random.normal(kf, (B,), dtype=jnp.float32)
    k_params = base_k + 1e-4 * jax.random.normal(kk, (B,), dtype=jnp.float32)

    ok = True
    for temp in (0.5, 0.1):
        loss = contrastive_loss(features, f_params, k_params,
                                temperature=temp, margin=1.0)
        loss = jax.block_until_ready(loss)
        ref = _reference_contrastive_loss(features, f_params, k_params,
                                          temperature=temp)
        ref = jax.block_until_ready(ref)
        assert jnp.isfinite(loss), "kernel produced non-finite loss"
        assert jnp.allclose(loss, ref, rtol=5e-4, atol=2e-5), (temp, loss, ref)
        ok = ok and bool(jnp.isfinite(loss))

    if ok:
        print("KERNEL_OK")
</pallas_src>

<mosaic_0001>
module attributes {stable_mosaic.version = 11 : i64} {
  func.func @_contrastive_loss_kernel(%arg0: i32, %arg1: i32, %arg2: memref<8x32xf32, #tpu.memory_space<vmem>>, %arg3: memref<8x32xf32, #tpu.memory_space<vmem>>, %arg4: memref<8x2xf32, #tpu.memory_space<vmem>>, %arg5: memref<2x8xf32, #tpu.memory_space<vmem>>, %arg6: memref<1x8x128xf32, #tpu.memory_space<vmem>>) attributes {dimension_semantics = [#tpu.dimension_semantics<parallel>, #tpu.dimension_semantics<arbitrary>], iteration_bounds = array<i64: 1, 1>, scalar_prefetch = 0 : i64, scratch_operands = 0 : i64, tpu.core_type = #tpu.core_type<tc>, window_params = [{transform_indices = @transform_0, window_bounds = array<i64: 8, 32>}, {transform_indices = @transform_1, window_bounds = array<i64: 8, 32>}, {transform_indices = @transform_2, window_bounds = array<i64: 8, 2>}, {transform_indices = @transform_3, window_bounds = array<i64: 2, 8>}, {transform_indices = @transform_4, window_bounds = array<i64: 1, 8, 128>}]} {
    %c0_i32 = arith.constant 0 : i32
    %0 = arith.cmpi eq, %arg1, %c0_i32 : i32
    %1 = arith.extui %0 : i1 to i32
    %c0_i32_0 = arith.constant 0 : i32
    %2 = arith.cmpi ne, %1, %c0_i32_0 : i32
    scf.if %2 {
      %cst_33 = arith.constant 0.000000e+00 : f32
      %105 = vector.broadcast %cst_33 : f32 to vector<1x8x128xf32>
      %c0_34 = arith.constant 0 : index
      %c0_35 = arith.constant 0 : index
      %c0_36 = arith.constant 0 : index
      %106 = vector.load %arg6[%c0_34, %c0_35, %c0_36] : memref<1x8x128xf32, #tpu.memory_space<vmem>>, vector<1x8x128xf32>
      tpu.vector_store %arg6[%c0_34, %c0_35, %c0_36], %105 {strides = array<i32>} : memref<1x8x128xf32, #tpu.memory_space<vmem>>, vector<1x8x128xf32>,
    } else {
    }
    %c0 = arith.constant 0 : index
    %c0_1 = arith.constant 0 : index
    %3 = vector.load %arg2[%c0, %c0_1] : memref<8x32xf32, #tpu.memory_space<vmem>>, vector<8x32xf32>
    %c0_2 = arith.constant 0 : index
    %c0_3 = arith.constant 0 : index
    %4 = vector.load %arg3[%c0_2, %c0_3] : memref<8x32xf32, #tpu.memory_space<vmem>>, vector<8x32xf32>
    %5 = arith.mulf %3, %3 : vector<8x32xf32>
    %cst = arith.constant dense<0.000000e+00> : vector<8xf32>
    %6 = vector.multi_reduction <add>, %5, %cst [1] : vector<8x32xf32> to vector<8xf32>
    %7 = vector.shape_cast %6 : vector<8xf32> to vector<8x1xf32>
    %cst_4 = arith.constant 1.000000e-24 : f32
    %8 = vector.broadcast %cst_4 : f32 to vector<8x1xf32>
    %9 = arith.maximumf %7, %8 : vector<8x1xf32>
    %10 = math.rsqrt %9 : vector<8x1xf32>
    %11 = vector.broadcast %10 : vector<8x1xf32> to vector<8x32xf32>
    %12 = arith.mulf %3, %11 : vector<8x32xf32>
    %13 = arith.mulf %4, %4 : vector<8x32xf32>
    %cst_5 = arith.constant dense<0.000000e+00> : vector<8xf32>
    %14 = vector.multi_reduction <add>, %13, %cst_5 [1] : vector<8x32xf32> to vector<8xf32>
    %15 = vector.shape_cast %14 : vector<8xf32> to vector<8x1xf32>
    %cst_6 = arith.constant 1.000000e-24 : f32
    %16 = vector.broadcast %cst_6 : f32 to vector<8x1xf32>
    %17 = arith.maximumf %15, %16 : vector<8x1xf32>
    %18 = math.rsqrt %17 : vector<8x1xf32>
    %19 = vector.broadcast %18 : vector<8x1xf32> to vector<8x32xf32>
    %20 = arith.mulf %4, %19 : vector<8x32xf32>
    %cst_7 = arith.constant dense<0.000000e+00> : vector<8x8xf32>
    %21 = tpu.matmul %12, %20, %cst_7 {dimension_numbers = #tpu.dot_dimension_numbers<[1], [1], [0], [0], [0, 0, 1, 0], [], []>} : vector<8x32xf32>, vector<8x32xf32>, vector<8x8xf32> -> vector<8x8xf32>
    %cst_8 = arith.constant 2.000000e+00 : f32
    %22 = vector.broadcast %cst_8 : f32 to vector<8x8xf32>
    %23 = arith.mulf %21, %22 : vector<8x8xf32>
    %cst_9 = arith.constant 2.000000e+00 : f32
    %24 = vector.broadcast %cst_9 : f32 to vector<8x8xf32>
    %25 = arith.subf %23, %24 : vector<8x8xf32>
    %26 = math.exp %25 : vector<8x8xf32>
    %c0_10 = arith.constant 0 : index
    %c0_11 = arith.constant 0 : index
    %27 = vector.load %arg4[%c0_10, %c0_11] : memref<8x2xf32, #tpu.memory_space<vmem>>, vector<8x2xf32>
    %c0_12 = arith.constant 0 : index
    %c0_13 = arith.constant 0 : index
    %28 = vector.load %arg5[%c0_12, %c0_13] : memref<2x8xf32, #tpu.memory_space<vmem>>, vector<2x8xf32>
    %29 = vector.extract_strided_slice %27 {offsets = [0, 0], sizes = [8, 1], strides = [1, 1]} : vector<8x2xf32> to vector<8x1xf32>
    %30 = vector.extract_strided_slice %28 {offsets = [0, 0], sizes = [1, 8], strides = [1, 1]} : vector<2x8xf32> to vector<1x8xf32>
    %31 = vector.broadcast %29 : vector<8x1xf32> to vector<8x8xf32>
    %32 = vector.broadcast %30 : vector<1x8xf32> to vector<8x8xf32>
    %33 = arith.subf %31, %32 : vector<8x8xf32>
    %34 = vector.extract_strided_slice %27 {offsets = [0, 1], sizes = [8, 1], strides = [1, 1]} : vector<8x2xf32> to vector<8x1xf32>
    %35 = vector.extract_strided_slice %28 {offsets = [1, 0], sizes = [1, 8], strides = [1, 1]} : vector<2x8xf32> to vector<1x8xf32>
    %36 = vector.broadcast %34 : vector<8x1xf32> to vector<8x8xf32>
    %37 = vector.broadcast %35 : vector<1x8xf32> to vector<8x8xf32>
    %38 = arith.subf %36, %37 : vector<8x8xf32>
    %39 = arith.mulf %33, %33 : vector<8x8xf32>
    %40 = arith.mulf %38, %38 : vector<8x8xf32>
    %41 = arith.addf %39, %40 : vector<8x8xf32>
    %cst_14 = arith.constant 9.99999974E-5 : f32
    %42 = vector.broadcast %cst_14 : f32 to vector<8x8xf32>
    %43 = arith.cmpf olt, %41, %42 : vector<8x8xf32>
    %cst_15 = arith.constant 8.99999984E-4 : f32
    %44 = vector.broadcast %cst_15 : f32 to vector<8x8xf32>
    %45 = arith.cmpf ogt, %41, %44 : vector<8x8xf32>
    %46 = arith.extui %43 : vector<8x8xi1> to vector<8x8xi32>
    %47 = arith.sitofp %46 : vector<8x8xi32> to vector<8x8xf32>
    %48 = arith.extui %45 : vector<8x8xi1> to vector<8x8xi32>
    %49 = arith.sitofp %48 : vector<8x8xi32> to vector<8x8xf32>
    %50 = vector.shape_cast %26 : vector<8x8xf32> to vector<1x8x8xf32>
    %cst_16 = arith.constant dense<0.000000e+00> : vector<1xf32>
    %51 = vector.multi_reduction <add>, %50, %cst_16 [1, 2] : vector<1x8x8xf32> to vector<1xf32>
    %52 = vector.shape_cast %51 : vector<1xf32> to vector<1x1x1xf32>
    %53 = vector.extract %52[0, 0, 0] : f32 from vector<1x1x1xf32>
    %54 = arith.mulf %26, %47 : vector<8x8xf32>
    %55 = vector.shape_cast %54 : vector<8x8xf32> to vector<1x8x8xf32>
    %cst_17 = arith.constant dense<0.000000e+00> : vector<1xf32>
    %56 = vector.multi_reduction <add>, %55, %cst_17 [1, 2] : vector<1x8x8xf32> to vector<1xf32>
    %57 = vector.shape_cast %56 : vector<1xf32> to vector<1x1x1xf32>
    %58 = vector.extract %57[0, 0, 0] : f32 from vector<1x1x1xf32>
    %59 = arith.mulf %26, %49 : vector<8x8xf32>
    %60 = vector.shape_cast %59 : vector<8x8xf32> to vector<1x8x8xf32>
    %cst_18 = arith.constant dense<0.000000e+00> : vector<1xf32>
    %61 = vector.multi_reduction <add>, %60, %cst_18 [1, 2] : vector<1x8x8xf32> to vector<1xf32>
    %62 = vector.shape_cast %61 : vector<1xf32> to vector<1x1x1xf32>
    %63 = vector.extract %62[0, 0, 0] : f32 from vector<1x1x1xf32>
    %64 = vector.shape_cast %47 : vector<8x8xf32> to vector<1x8x8xf32>
    %cst_19 = arith.constant dense<0.000000e+00> : vector<1xf32>
    %65 = vector.multi_reduction <add>, %64, %cst_19 [1, 2] : vector<1x8x8xf32> to vector<1xf32>
    %66 = vector.shape_cast %65 : vector<1xf32> to vector<1x1x1xf32>
    %67 = vector.extract %66[0, 0, 0] : f32 from vector<1x1x1xf32>
    %68 = vector.shape_cast %49 : vector<8x8xf32> to vector<1x8x8xf32>
    %cst_20 = arith.constant dense<0.000000e+00> : vector<1xf32>
    %69 = vector.multi_reduction <add>, %68, %cst_20 [1, 2] : vector<1x8x8xf32> to vector<1xf32>
    %70 = vector.shape_cast %69 : vector<1xf32> to vector<1x1x1xf32>
    %71 = vector.extract %70[0, 0, 0] : f32 from vector<1x1x1xf32>
    %72 = tpu.iota {dimensions = array<i32: 2>} : vector<1x8x128xi32>
    %c0_i32_21 = arith.constant 0 : i32
    %73 = vector.broadcast %c0_i32_21 : i32 to vector<1x8x128xi32>
    %74 = arith.cmpi eq, %72, %73 : vector<1x8x128xi32>
    %cst_22 = arith.constant 0.000000e+00 : f32
    %75 = vector.broadcast %53 : f32 to vector<1x8x128xf32>
    %76 = vector.broadcast %cst_22 : f32 to vector<1x8x128xf32>
    %77 = arith.select %74, %75, %76 : vector<1x8x128xi1>, vector<1x8x128xf32>
    %c1_i32 = arith.constant 1 : i32
    %78 = vector.broadcast %c1_i32 : i32 to vector<1x8x128xi32>
    %79 = arith.cmpi eq, %72, %78 : vector<1x8x128xi32>
    %cst_23 = arith.constant 0.000000e+00 : f32
    %80 = vector.broadcast %58 : f32 to vector<1x8x128xf32>
    %81 = vector.broadcast %cst_23 : f32 to vector<1x8x128xf32>
    %82 = arith.select %79, %80, %81 : vector<1x8x128xi1>, vector<1x8x128xf32>
    %83 = arith.addf %77, %82 : vector<1x8x128xf32>
    %c2_i32 = arith.constant 2 : i32
    %84 = vector.broadcast %c2_i32 : i32 to vector<1x8x128xi32>
    %85 = arith.cmpi eq, %72, %84 : vector<1x8x128xi32>
    %cst_24 = arith.constant 0.000000e+00 : f32
    %86 = vector.broadcast %63 : f32 to vector<1x8x128xf32>
    %87 = vector.broadcast %cst_24 : f32 to vector<1x8x128xf32>
    %88 = arith.select %85, %86, %87 : vector<1x8x128xi1>, vector<1x8x128xf32>
    %89 = arith.addf %83, %88 : vector<1x8x128xf32>
    %c3_i32 = arith.constant 3 : i32
    %90 = vector.broadcast %c3_i32 : i32 to vector<1x8x128xi32>
    %91 = arith.cmpi eq, %72, %90 : vector<1x8x128xi32>
    %cst_25 = arith.constant 0.000000e+00 : f32
    %92 = vector.broadcast %67 : f32 to vector<1x8x128xf32>
    %93 = vector.broadcast %cst_25 : f32 to vector<1x8x128xf32>
    %94 = arith.select %91, %92, %93 : vector<1x8x128xi1>, vector<1x8x128xf32>
    %95 = arith.addf %89, %94 : vector<1x8x128xf32>
    %c4_i32 = arith.constant 4 : i32
    %96 = vector.broadcast %c4_i32 : i32 to vector<1x8x128xi32>
    %97 = arith.cmpi eq, %72, %96 : vector<1x8x128xi32>
    %cst_26 = arith.constant 0.000000e+00 : f32
    %98 = vector.broadcast %71 : f32 to vector<1x8x128xf32>
    %99 = vector.broadcast %cst_26 : f32 to vector<1x8x128xf32>
    %100 = arith.select %97, %98, %99 : vector<1x8x128xi1>, vector<1x8x128xf32>
    %101 = arith.addf %95, %100 : vector<1x8x128xf32>
    %c0_27 = arith.constant 0 : index
    %c0_28 = arith.constant 0 : index
    %c0_29 = arith.constant 0 : index
    %102 = vector.load %arg6[%c0_27, %c0_28, %c0_29] : memref<1x8x128xf32, #tpu.memory_space<vmem>>, vector<1x8x128xf32>
    %103 = arith.addf %102, %101 : vector<1x8x128xf32>
    %c0_30 = arith.constant 0 : index
    %c0_31 = arith.constant 0 : index
    %c0_32 = arith.constant 0 : index
    %104 = vector.load %arg6[%c0_30, %c0_31, %c0_32] : memref<1x8x128xf32, #tpu.memory_space<vmem>>, vector<1x8x128xf32>
    tpu.vector_store %arg6[%c0_30, %c0_31, %c0_32], %103 {strides = array<i32>} : memref<1x8x128xf32, #tpu.memory_space<vmem>>, vector<1x8x128xf32>,
    return
  }
  func.func @transform_0(%arg0: i32, %arg1: i32) -> (i32, i32) {
    %c0_i32 = arith.constant 0 : i32
    %c0_i32_0 = arith.constant 0 : i32
    return %arg0, %c0_i32 : i32, i32
  }
  func.func @transform_1(%arg0: i32, %arg1: i32) -> (i32, i32) {
    %c0_i32 = arith.constant 0 : i32
    %c0_i32_0 = arith.constant 0 : i32
    return %arg1, %c0_i32 : i32, i32
  }
  func.func @transform_2(%arg0: i32, %arg1: i32) -> (i32, i32) {
    %c0_i32 = arith.constant 0 : i32
    %c0_i32_0 = arith.constant 0 : i32
    return %arg0, %c0_i32 : i32, i32
  }
  func.func @transform_3(%arg0: i32, %arg1: i32) -> (i32, i32) {
    %c0_i32 = arith.constant 0 : i32
    %c0_i32_0 = arith.constant 0 : i32
    return %c0_i32, %arg1 : i32, i32
  }
  func.func @transform_4(%arg0: i32, %arg1: i32) -> (i32, i32, i32) {
    %c0_i32 = arith.constant 0 : i32
    %c0_i32_0 = arith.constant 0 : i32
    %c0_i32_1 = arith.constant 0 : i32
    return %arg0, %c0_i32, %c0_i32_0 : i32, i32, i32
  }
}

</mosaic_0001>

<llo_original>
// kernel: tpu_custom_call.1
$region0: #{tpu_custom_call.1}
  #allocation0 [shape = 'u32[]', space=smem, size = 0x4, offset = 0x4, fixed_abs, tag = 'smem constant byte address 0x4 - core index']
  #allocation1 [shape = 'u32[144,128]{1,0:T(1,128)}', space=vmem, size = 0x12000, scoped, tag = 'internal scratch']
  %s0 = inlined_call_operand.vmem [shape: f32[8,32], index: 0, kind: input, shape index: {}]
  %s1 = inlined_call_operand.hbm [shape: f32[8,32], index: 1, kind: input, shape index: {}]
  %s2 = inlined_call_operand.vmem [shape: f32[8,2], index: 2, kind: input, shape index: {}]
  %s3 = inlined_call_operand.vmem [shape: f32[2,8], index: 3, kind: input, shape index: {}]
  %s4 = inlined_call_operand.hbm [shape: f32[1,8,128], index: 4, kind: output, shape index: {}]
  %s5 = sld [smem:[#allocation0]]
  $region34: #{tpu_custom_call.1} parent=0
    _
  %s7 = ssub.s32 1, %s5
  %s8 = scalar_select 0, %s7, %s5
  $region1: #{tpu_custom_call.1} parent=0
    #allocation2 [shape = 'u8[4096]{0}', space=vmem, size = 0x1000, scoped, tag = 'input window, operand 1, single buffered']
    #allocation3 [shape = 's32[1]{0}', space=sflag, size = 0x4, scoped, tag = 'scoped memory for tpu_custom_call.1']
    #allocation4 [shape = 's32[1]{0}', space=sflag, size = 0x4, scoped, tag = 'scoped memory for tpu_custom_call.1']
    #allocation5 [shape = 'u8[4096]{0}', space=vmem, size = 0x1000, scoped, tag = 'output window, operand 0, single buffered']
    %9 = vsyncpa [#allocation3], 0
    %10 = vsyncpa [#allocation4], 0
    // Predicated region
    $region2: #{tpu_custom_call.1} parent=1 // pred_check
      _
    $region3: #{tpu_custom_call.1} parent=1 // pred_check_branch
      %12 = sbr.rel (0) target = $region5
    $region4: #{tpu_custom_call.1} parent=1 // pred_region
      _
    $region5: #{tpu_custom_call.1} parent=1 // pred_fallthru
      _
    // Predicated region
    $region6: #{tpu_custom_call.1} parent=1 // pred_check
      _
    $region7: #{tpu_custom_call.1} parent=1 // pred_check_branch
      %14 = sbr.rel (0) target = $region9
    $region8: #{tpu_custom_call.1} parent=1 // pred_region
      %s16 = ssub.s32 128, 128
      %17 = vsyncadd [#allocation3], %s16
      %s19 = sshll.u32 [#allocation2], 4
      %s20 = int_to_ptr.vmem [resolvable:$true] %s19
      %22 = dma.hbm_to_vmem [thread:$0]  %s1, 128, %s20, [#allocation3]
    $region9: #{tpu_custom_call.1} parent=1 // pred_fallthru
      _
    // Predicated region
    $region10: #{tpu_custom_call.1} parent=1 // pred_check
      _
    $region11: #{tpu_custom_call.1} parent=1 // pred_check_branch
      %24 = sbr.rel (0) target = $region13
    $region12: #{tpu_custom_call.1} parent=1 // pred_region
      _
    $region13: #{tpu_custom_call.1} parent=1 // pred_fallthru
      _
    // Predicated region
    $region14: #{tpu_custom_call.1} parent=1 // pred_check
      _
    $region15: #{tpu_custom_call.1} parent=1 // pred_check_branch
      %26 = sbr.rel (0) target = $region17
    $region16: #{tpu_custom_call.1} parent=1 // pred_region
      _
    $region17: #{tpu_custom_call.1} parent=1 // pred_fallthru
      _
    // Predicated region
    $region18: #{tpu_custom_call.1} parent=1 // pred_check
      _
    $region19: #{tpu_custom_call.1} parent=1 // pred_check_branch
      %28 = sbr.rel (0) target = $region21
    $region20: #{tpu_custom_call.1} parent=1 // pred_region
      %29 = dma.done [#allocation3], 128
    $region21: #{tpu_custom_call.1} parent=1 // pred_fallthru
      _
    %p30 = scmp.eq.s32.totalorder 0, 0
    // Predicated region
    $region22: #{tpu_custom_call.1} parent=1 // pred_check
      %p31 = pneg %p30
    $region23: #{tpu_custom_call.1} parent=1 // pred_check_branch
      %33 = sbr.rel (%p31) target = $region25
    $region24: #{tpu_custom_call.1} parent=1 // pred_region
      %34 = vst [vmem:[#allocation5] sm:$0xff] 0.0
    $region25: #{tpu_custom_call.1} parent=1 // pred_fallthru
      _
    %v35 = vld [vmem:[%s0] sm:$0xff]
    %v36 = vld [vmem:[#allocation2] sm:$0xff]
    %v37 = vmul.f32 %v35, %v35
    %vm38 = vcmask 261120
    %v39 = vsel %vm38, %v37, 0.0
    %40 = vadd.xlane.f32.xlu0 %v39
    %v41 = vpop.xlane.xlu0 %40
    %v42 = vmax.f32 %v41, 1e-24
    %v43 = vrsqrt.pop %v42
    %v44 = vmul.f32 %v35, %v43
    %v45 = vmul.f32 %v36, %v36
    %v46 = vsel %vm38, %v45, 0.0
    %47 = vadd.xlane.f32.xlu0 %v46
    %v48 = vpop.xlane.xlu0 %47
    %v49 = vmax.f32 %v48, 1e-24
    %v50 = vrsqrt.pop %v49
    %v51 = vmul.f32 %v36, %v50
    %v53 = vsel %vm38, %v44, 0
    %v56 = vsel %vm38, %v51, 0
    %58 = vmatprep.subr.mxu0 0.0
    %59 = vmatpush1.xpose.msra.mxu0 %v56
    %60 = vmatprep.subr.mxu0 0.0
    %61 = vmatpush1.xpose.msra.mxu0 0.0
    %62 = vmatprep.subr.mxu0 0.0
    %63 = vmatpush1.xpose.msra.mxu0 0.0
    %64 = vmatprep.subr.mxu0 0.0
    %65 = vmatpush1.xpose.msra.mxu0 0.0
    %66 = vmatprep.subr.mxu0 0.0
    %67 = vmatpush1.xpose.msra.mxu0 0.0
    %68 = vmatprep.subr.mxu0 0.0
    %69 = vmatpush1.xpose.msra.mxu0 0.0
    %70 = vmatprep.subr.mxu0 0.0
    %71 = vmatpush1.xpose.msra.mxu0 0.0
    %72 = vmatprep.subr.mxu0 0.0
    %73 = vmatpush1.xpose.msra.mxu0 0.0
    %74 = vmatprep.subr.mxu0 0.0
    %75 = vmatpush1.xpose.msra.mxu0 0.0
    %76 = vmatprep.subr.mxu0 0.0
    %77 = vmatpush1.xpose.msra.mxu0 0.0
    %78 = vmatprep.subr.mxu0 0.0
    %79 = vmatpush1.xpose.msra.mxu0 0.0
    %80 = vmatprep.subr.mxu0 0.0
    %81 = vmatpush1.xpose.msra.mxu0 0.0
    %82 = vmatprep.subr.mxu0 0.0
    %83 = vmatpush1.xpose.msra.mxu0 0.0
    %84 = vmatprep.subr.mxu0 0.0
    %85 = vmatpush1.xpose.msra.mxu0 0.0
    %86 = vmatprep.subr.mxu0 0.0
    %87 = vmatpush1.xpose.msra.mxu0 0.0
    %88 = vmatprep.subr.mxu0 0.0
    %89 = vmatpush1.xpose.msra.mxu0 0.0
    %90 = vmatprep.subr.mxu0 0.0
    %91 = vmatpush1.xpose.msra.mxu0 0.0
    %92 = vmatprep.subr.mxu0 0.0
    %93 = vmatpush1.xpose.msra.mxu0 0.0
    %94 = vmatprep.subr.mxu0 0.0
    %95 = vmatpush1.xpose.msra.mxu0 0.0
    %96 = vmatprep.subr.mxu0 0.0
    %97 = vmatpush1.xpose.msra.mxu0 0.0
    %98 = vmatprep.subr.mxu0 0.0
    %99 = vmatpush1.xpose.msra.mxu0 0.0
    %100 = vmatprep.subr.mxu0 0.0
    %101 = vmatpush1.xpose.msra.mxu0 0.0
    %102 = vmatprep.subr.mxu0 0.0
    %103 = vmatpush1.xpose.msra.mxu0 0.0
    %104 = vmatprep.subr.mxu0 0.0
    %105 = vmatpush1.xpose.msra.mxu0 0.0
    %106 = vmatprep.subr.mxu0 0.0
    %107 = vmatpush1.xpose.msra.mxu0 0.0
    %108 = vmatprep.subr.mxu0 0.0
    %109 = vmatpush1.xpose.msra.mxu0 0.0
    %110 = vmatprep.subr.mxu0 0.0
    %111 = vmatpush1.xpose.msra.mxu0 0.0
    %112 = vmatprep.subr.mxu0 0.0
    %113 = vmatpush1.xpose.msra.mxu0 0.0
    %114 = vmatprep.subr.mxu0 0.0
    %115 = vmatpush1.xpose.msra.mxu0 0.0
    %116 = vmatprep.subr.mxu0 0.0
    %117 = vmatpush1.xpose.msra.mxu0 0.0
    %118 = vmatprep.subr.mxu0 0.0
    %119 = vmatpush1.xpose.msra.mxu0 0.0
    %120 = vmatprep.subr.mxu0 0.0
    %121 = vmatpush1.xpose.msra.mxu0 0.0
    %122 = vmatprep.mubr.f32.mxu0 0.0
    %123 = vmatmul.mubr.f32.gmra.mrb[0].mxu0 %v53
    %v124 = vpop.f32.mrb[0].mxu0
    %v125 = vadd.f32 0.0, %v124
    %v126 = vpop.f32.mrb[0].mxu0
    %127 = vdwg.mxu0
    %v128 = vmul.f32 %v125, 2.0
    %v129 = vsub.f32 %v128, 2.0
    %v130 = vmul.f32 %v129, 1.442695
    %v131 = vpow.pop %v130
    %v132 = vld [vmem:[%s2] sm:$0xff]
    %v133 = vld [vmem:[%s3] sm:$0x3]
    %135 = vset.pattern.permute.xlu0 0
    %136 = vperm.xlu0 %135, %v132
    %v137 = vpop.permute.xlu0 %136
    %v139 = vlaneseq
    %v140 = vshrl.u32 %v139, 7
    %v141 = vsub.s32 0, %v140
    %v142 = vrot.slane %v133, %v141
    %v143 = vsub.f32 %v137, %v142
    %144 = vset.pattern.permute.xlu0 1
    %145 = vperm.xlu0 %144, %v132
    %v146 = vpop.permute.xlu0 %145
    %v148 = vlaneseq
    %v149 = vshrl.u32 %v148, 7
    %v150 = vsub.s32 1, %v149
    %v151 = vrot.slane %v133, %v150
    %v152 = vsub.f32 %v146, %v151
    %v153 = vmul.f32 %v143, %v143
    %v154 = vmul.f32 %v152, %v152
    %v155 = vadd.f32 %v153, %v154
    %vm156 = vcmp.lt.f32.partialorder %v155, 0.0001
    %vm157 = vcmp.gt.f32.partialorder %v155, 0.0009
    %v158 = vsel %vm156, 1, 0
    %v159 = vcvt.s32.f32 %v158
    %v160 = vsel %vm157, 1, 0
    %v161 = vcvt.s32.f32 %v160
    %vm162 = vcmask 64512
    %v163 = vsel %vm162, %v131, 0.0
    %164 = vadd.xlane.f32.xlu0 %v163
    %v165 = vpop.xlane.xlu0 %164
    %v166 = vrot.slane %v165, 4
    %v167 = vadd.f32 %v165, %v166
    %v168 = vrot.slane %v167, 2
    %v169 = vadd.f32 %v167, %v168
    %v170 = vrot.slane %v169, 1
    %v171 = vadd.f32 %v169, %v170
    %s172 = vtos %v171
    %v173 = vmul.f32 %v131, %v159
    %v174 = vsel %vm162, %v173, 0.0
    %175 = vadd.xlane.f32.xlu0 %v174
    %v176 = vpop.xlane.xlu0 %175
    %v177 = vrot.slane %v176, 4
    %v178 = vadd.f32 %v176, %v177
    %v179 = vrot.slane %v178, 2
    %v180 = vadd.f32 %v178, %v179
    %v181 = vrot.slane %v180, 1
    %v182 = vadd.f32 %v180, %v181
    %s183 = vtos %v182
    %v184 = vmul.f32 %v131, %v161
    %v185 = vsel %vm162, %v184, 0.0
    %186 = vadd.xlane.f32.xlu0 %v185
    %v187 = vpop.xlane.xlu0 %186
    %v188 = vrot.slane %v187, 4
    %v189 = vadd.f32 %v187, %v188
    %v190 = vrot.slane %v189, 2
    %v191 = vadd.f32 %v189, %v190
    %v192 = vrot.slane %v191, 1
    %v193 = vadd.f32 %v191, %v192
    %s194 = vtos %v193
    %v195 = vsel %vm162, %v159, 0.0
    %196 = vadd.xlane.f32.xlu0 %v195
    %v197 = vpop.xlane.xlu0 %196
    %v198 = vrot.slane %v197, 4
    %v199 = vadd.f32 %v197, %v198
    %v200 = vrot.slane %v199, 2
    %v201 = vadd.f32 %v199, %v200
    %v202 = vrot.slane %v201, 1
    %v203 = vadd.f32 %v201, %v202
    %s204 = vtos %v203
    %v205 = vsel %vm162, %v161, 0.0
    %206 = vadd.xlane.f32.xlu0 %v205
    %v207 = vpop.xlane.xlu0 %206
    %v208 = vrot.slane %v207, 4
    %v209 = vadd.f32 %v207, %v208
    %v210 = vrot.slane %v209, 2
    %v211 = vadd.f32 %v209, %v210
    %v212 = vrot.slane %v211, 1
    %v213 = vadd.f32 %v211, %v212
    %s214 = vtos %v213
    %v215 = vlaneseq
    %v216 = vand.u32 %v215, 127
    %vm217 = vcmp.eq.s32.totalorder %v216, 0
    %v218 = vstv %s172
    %v219 = vsel %vm217, %v218, 0.0
    %vm220 = vcmp.eq.s32.totalorder %v216, 1
    %v221 = vstv %s183
    %v222 = vsel %vm220, %v221, 0.0
    %v223 = vadd.f32 %v219, %v222
    %vm224 = vcmp.eq.s32.totalorder %v216, 2
    %v225 = vstv %s194
    %v226 = vsel %vm224, %v225, 0.0
    %v227 = vadd.f32 %v223, %v226
    %vm228 = vcmp.eq.s32.totalorder %v216, 3
    %v229 = vstv %s204
    %v230 = vsel %vm228, %v229, 0.0
    %v231 = vadd.f32 %v227, %v230
    %vm232 = vcmp.eq.s32.totalorder %v216, 4
    %v233 = vstv %s214
    %v234 = vsel %vm232, %v233, 0.0
    %v235 = vadd.f32 %v231, %v234
    %v236 = vld [vmem:[#allocation5] sm:$0xff]
    %v237 = vadd.f32 %v236, %v235
    %238 = vst [vmem:[#allocation5] sm:$0xff] %v237
    // Predicated region
    $region26: #{tpu_custom_call.1} parent=1 // pred_check
      _
    $region27: #{tpu_custom_call.1} parent=1 // pred_check_branch
      %240 = sbr.rel (0) target = $region29
    $region28: #{tpu_custom_call.1} parent=1 // pred_region
      %s242 = ssub.s32 128, 128
      %243 = vsyncadd [#allocation4], %s242
      %s245 = sshll.u32 [#allocation5], 4
      %s246 = int_to_ptr.vmem [resolvable:$true] %s245
      %248 = dma.vmem_to_hbm [thread:$0]  %s246, 128, %s4, [#allocation4]
    $region29: #{tpu_custom_call.1} parent=1 // pred_fallthru
      _
    // Predicated region
    $region30: #{tpu_custom_call.1} parent=1 // pred_check
      _
    $region31: #{tpu_custom_call.1} parent=1 // pred_check_branch
      %250 = sbr.rel (0) target = $region33
    $region32: #{tpu_custom_call.1} parent=1 // pred_region
      %251 = dma.done [#allocation4], 128
    $region33: #{tpu_custom_call.1} parent=1 // pred_fallthru
      _
    %252 = vsyncpa [#allocation3], 1
    %253 = vsyncpa [#allocation4], 1

</llo_original>
